<compile_context>
chip_gen: v6e
topology: v6e:2x2x1
jax: 0.10.0
libtpu: 0.0.40
codegen_flags: <defaults>
</compile_context>

<pallas_src>
import jax
import jax.numpy as jnp
from jax.experimental import pallas as pl
from jax.experimental.pallas import tpu as pltpu

F_X = 32
F_E = 32
IN_DIM = 2 * F_X + F_E      # 96
HIDDEN = 64
OUT_DIM = 64

DEFAULT_TILE_E = 8192       # rows per grid step (multiple of 8)


def edge_mlp_kernel(src_ref, dest_ref, edge_ref,
                    w1_ref, b1_ref, w2_ref, b2_ref, out_ref):
    # Fused "concat + first Linear": three K=32 matmuls accumulating in f32.
    h = jnp.dot(src_ref[...], w1_ref[0:F_X, :],
                preferred_element_type=jnp.float32)
    h += jnp.dot(dest_ref[...], w1_ref[F_X:2 * F_X, :],
                 preferred_element_type=jnp.float32)
    h += jnp.dot(edge_ref[...], w1_ref[2 * F_X:IN_DIM, :],
                 preferred_element_type=jnp.float32)
    h = jnp.maximum(h + b1_ref[...], 0.0)
    # Second Linear.
    out = jnp.dot(h, w2_ref[...], preferred_element_type=jnp.float32)
    out = out + b2_ref[...]
    out_ref[...] = out.astype(out_ref.dtype)


def _round_up(x, m):
    return ((x + m - 1) // m) * m


def _choose_tile(E):
    e8 = _round_up(E, 8)
    tile = min(DEFAULT_TILE_E, e8)
    # v7x has 2 TensorCores: keep >= 2 grid steps when the problem is big
    # enough, otherwise one core sits idle. (No-op effect on v5e/v6e.)
    if pl.cdiv(e8, tile) < 2:
        half = _round_up(pl.cdiv(E, 2), 8)
        if 8 <= half < tile:
            tile = half
    return tile


def edge_model_forward(src, dest, edge_attr, params, *, tile_e=None,
                       out_dtype=jnp.float32):
    """src, dest: (E, F_X); edge_attr: (E, F_E) -> (E, OUT_DIM)."""
    E = src.shape[0]
    w1, b1, w2, b2 = (p.astype(jnp.float32) for p in params)
    src = src.astype(jnp.float32)
    dest = dest.astype(jnp.float32)
    edge_attr = edge_attr.astype(jnp.float32)

    if tile_e is None:
        tile_e = _choose_tile(E)
    assert tile_e == E or tile_e % 8 == 0, "tile_e must be a multiple of 8 (or == E)"

    # Ragged tail: pad rows up to a tile multiple; padded rows (zeros) are
    # computed and sliced off afterwards.
    E_pad = _round_up(E, tile_e)
    if E_pad != E:
        pad = ((0, E_pad - E), (0, 0))
        src = jnp.pad(src, pad)
        dest = jnp.pad(dest, pad)
        edge_attr = jnp.pad(edge_attr, pad)

    grid = (E_pad // tile_e,)
    row_spec = lambda f: pl.BlockSpec((tile_e, f), lambda i: (i, 0))
    resident = lambda shape: pl.BlockSpec(shape, lambda i: (0, 0))

    out_itemsize = jnp.dtype(out_dtype).itemsize
    flops = 2 * E_pad * (IN_DIM * HIDDEN + HIDDEN * OUT_DIM)
    bytes_accessed = (E_pad * (3 * F_X * 4 + OUT_DIM * out_itemsize)
                      + (IN_DIM * HIDDEN + HIDDEN * OUT_DIM
                         + HIDDEN + OUT_DIM) * 4)

    out = pl.pallas_call(
        edge_mlp_kernel,
        out_shape=jax.ShapeDtypeStruct((E_pad, OUT_DIM), out_dtype),
        grid_spec=pltpu.PrefetchScalarGridSpec(
            num_scalar_prefetch=0,
            grid=grid,
            in_specs=[
                row_spec(F_X),                  # src        (tile_e, 32)
                row_spec(F_X),                  # dest       (tile_e, 32)
                row_spec(F_E),                  # edge_attr  (tile_e, 32)
                resident((IN_DIM, HIDDEN)),     # W1 (96, 64), rows = [src|dest|edge]
                resident((1, HIDDEN)),          # b1
                resident((HIDDEN, OUT_DIM)),    # W2 (64, 64)
                resident((1, OUT_DIM)),         # b2
            ],
            out_specs=pl.BlockSpec((tile_e, OUT_DIM), lambda i: (i, 0)),
        ),
        compiler_params=pltpu.CompilerParams(
            dimension_semantics=("parallel",),
            vmem_limit_bytes=32 * 1024 * 1024,
        ),
        cost_estimate=pl.CostEstimate(
            flops=flops, transcendentals=0, bytes_accessed=bytes_accessed),
    )(src, dest, edge_attr, w1, b1, w2, b2)

    return out[:E] if E_pad != E else out


def init_params(key):
    """Deterministic init matching torch Linear(96,64) and Linear(64,64) shapes
    (weights stored transposed: (in, out)); W1 row order must match the
    cat([src, dest, edge_attr]) column order."""
    k1, k2, k3, k4 = jax.random.split(key, 4)
    lim1 = 1.0 / jnp.sqrt(IN_DIM)
    lim2 = 1.0 / jnp.sqrt(HIDDEN)
    w1 = jax.random.uniform(k1, (IN_DIM, HIDDEN), jnp.float32, -lim1, lim1)
    b1 = jax.random.uniform(k2, (1, HIDDEN), jnp.float32, -lim1, lim1)
    w2 = jax.random.uniform(k3, (HIDDEN, OUT_DIM), jnp.float32, -lim2, lim2)
    b2 = jax.random.uniform(k4, (1, OUT_DIM), jnp.float32, -lim2, lim2)
    return w1, b1, w2, b2


def reference_forward_f32(src, dest, edge_attr, w1, b1, w2, b2):
    x = jnp.concatenate([src, dest, edge_attr], axis=1)
    h = jnp.maximum(x @ w1 + b1, 0.0)
    return h @ w2 + b2


if __name__ == "__main__":
    key = jax.random.PRNGKey(0)
    k_src, k_dst, k_e, k_p = jax.random.split(key, 4)

    E = 256  # number of edges; auto tile picks 128 -> 2 parallel grid steps
    src = jax.random.normal(k_src, (E, F_X), jnp.float32)
    dest = jax.random.normal(k_dst, (E, F_X), jnp.float32)
    edge_attr = jax.random.normal(k_e, (E, F_E), jnp.float32)
    # u / batch are unused by EdgeModel.forward; omitted.

    params = init_params(k_p)

    out = edge_model_forward(src, dest, edge_attr, params)
    out = jax.block_until_ready(out)
    assert out.shape == (E, OUT_DIM)
    assert out.dtype == jnp.float32

    # Check against the full-f32 PyTorch-equivalent reference (kernel math is
    # all f32, so the tolerance can be tight).
    ref_f32 = reference_forward_f32(src, dest, edge_attr, *params)
    assert jnp.allclose(out, ref_f32, atol=5e-3, rtol=5e-3), \
        "mismatch vs f32 JAX reference"

    # Also exercise the ragged-tail / user-tile path once.
    E2 = 100
    out2 = edge_model_forward(src[:E2], dest[:E2], edge_attr[:E2], params)
    out2 = jax.block_until_ready(out2)
    assert out2.shape == (E2, OUT_DIM)
    assert jnp.allclose(out2, ref_f32[:E2], atol=5e-3, rtol=5e-3), \
        "mismatch vs f32 JAX reference (ragged E)"

    print("KERNEL_OK")
</pallas_src>

<mosaic_0001>
module attributes {stable_mosaic.version = 11 : i64} {
  func.func @edge_mlp_kernel(%arg0: i32, %arg1: memref<128x32xf32, #tpu.memory_space<vmem>>, %arg2: memref<128x32xf32, #tpu.memory_space<vmem>>, %arg3: memref<128x32xf32, #tpu.memory_space<vmem>>, %arg4: memref<96x64xf32, #tpu.memory_space<vmem>>, %arg5: memref<1x64xf32, #tpu.memory_space<vmem>>, %arg6: memref<64x64xf32, #tpu.memory_space<vmem>>, %arg7: memref<1x64xf32, #tpu.memory_space<vmem>>, %arg8: memref<128x64xf32, #tpu.memory_space<vmem>>) attributes {dimension_semantics = [#tpu.dimension_semantics<parallel>], iteration_bounds = array<i64: 2>, scalar_prefetch = 0 : i64, scratch_operands = 0 : i64, tpu.core_type = #tpu.core_type<tc>, window_params = [{transform_indices = @transform_0, window_bounds = array<i64: 128, 32>}, {transform_indices = @transform_1, window_bounds = array<i64: 128, 32>}, {transform_indices = @transform_2, window_bounds = array<i64: 128, 32>}, {pipeline_mode = #tpu.pipeline_mode<synchronous>, transform_indices = @transform_3, window_bounds = array<i64: 96, 64>}, {pipeline_mode = #tpu.pipeline_mode<synchronous>, transform_indices = @transform_4, window_bounds = array<i64: 1, 64>}, {pipeline_mode = #tpu.pipeline_mode<synchronous>, transform_indices = @transform_5, window_bounds = array<i64: 64, 64>}, {pipeline_mode = #tpu.pipeline_mode<synchronous>, transform_indices = @transform_6, window_bounds = array<i64: 1, 64>}, {transform_indices = @transform_7, window_bounds = array<i64: 128, 64>}]} {
    %c0 = arith.constant 0 : index
    %c0_0 = arith.constant 0 : index
    %0 = vector.load %arg1[%c0, %c0_0] : memref<128x32xf32, #tpu.memory_space<vmem>>, vector<128x32xf32>
    %c0_1 = arith.constant 0 : index
    %c0_2 = arith.constant 0 : index
    %1 = vector.load %arg4[%c0_1, %c0_2] : memref<96x64xf32, #tpu.memory_space<vmem>>, vector<32x64xf32>
    %cst = arith.constant dense<0.000000e+00> : vector<128x64xf32>
    %2 = tpu.matmul %0, %1, %cst {dimension_numbers = #tpu.dot_dimension_numbers<[1], [0], [0], [1], [0, 0, 1, 1], [], []>} : vector<128x32xf32>, vector<32x64xf32>, vector<128x64xf32> -> vector<128x64xf32>
    %c0_3 = arith.constant 0 : index
    %c0_4 = arith.constant 0 : index
    %3 = vector.load %arg2[%c0_3, %c0_4] : memref<128x32xf32, #tpu.memory_space<vmem>>, vector<128x32xf32>
    %c32 = arith.constant 32 : index
    %c0_5 = arith.constant 0 : index
    %4 = vector.load %arg4[%c32, %c0_5] : memref<96x64xf32, #tpu.memory_space<vmem>>, vector<32x64xf32>
    %cst_6 = arith.constant dense<0.000000e+00> : vector<128x64xf32>
    %5 = tpu.matmul %3, %4, %cst_6 {dimension_numbers = #tpu.dot_dimension_numbers<[1], [0], [0], [1], [0, 0, 1, 1], [], []>} : vector<128x32xf32>, vector<32x64xf32>, vector<128x64xf32> -> vector<128x64xf32>
    %6 = arith.addf %2, %5 : vector<128x64xf32>
    %c0_7 = arith.constant 0 : index
    %c0_8 = arith.constant 0 : index
    %7 = vector.load %arg3[%c0_7, %c0_8] : memref<128x32xf32, #tpu.memory_space<vmem>>, vector<128x32xf32>
    %c64 = arith.constant 64 : index
    %c0_9 = arith.constant 0 : index
    %8 = vector.load %arg4[%c64, %c0_9] : memref<96x64xf32, #tpu.memory_space<vmem>>, vector<32x64xf32>
    %cst_10 = arith.constant dense<0.000000e+00> : vector<128x64xf32>
    %9 = tpu.matmul %7, %8, %cst_10 {dimension_numbers = #tpu.dot_dimension_numbers<[1], [0], [0], [1], [0, 0, 1, 1], [], []>} : vector<128x32xf32>, vector<32x64xf32>, vector<128x64xf32> -> vector<128x64xf32>
    %10 = arith.addf %6, %9 : vector<128x64xf32>
    %c0_11 = arith.constant 0 : index
    %c0_12 = arith.constant 0 : index
    %11 = vector.load %arg5[%c0_11, %c0_12] : memref<1x64xf32, #tpu.memory_space<vmem>>, vector<1x64xf32>
    %12 = vector.broadcast %11 : vector<1x64xf32> to vector<128x64xf32>
    %13 = arith.addf %10, %12 : vector<128x64xf32>
    %cst_13 = arith.constant 0.000000e+00 : f32
    %14 = vector.broadcast %cst_13 : f32 to vector<128x64xf32>
    %15 = arith.maximumf %13, %14 : vector<128x64xf32>
    %c0_14 = arith.constant 0 : index
    %c0_15 = arith.constant 0 : index
    %16 = vector.load %arg6[%c0_14, %c0_15] : memref<64x64xf32, #tpu.memory_space<vmem>>, vector<64x64xf32>
    %cst_16 = arith.constant dense<0.000000e+00> : vector<128x64xf32>
    %17 = tpu.matmul %15, %16, %cst_16 {dimension_numbers = #tpu.dot_dimension_numbers<[1], [0], [0], [1], [0, 0, 1, 1], [], []>} : vector<128x64xf32>, vector<64x64xf32>, vector<128x64xf32> -> vector<128x64xf32>
    %c0_17 = arith.constant 0 : index
    %c0_18 = arith.constant 0 : index
    %18 = vector.load %arg7[%c0_17, %c0_18] : memref<1x64xf32, #tpu.memory_space<vmem>>, vector<1x64xf32>
    %19 = vector.broadcast %18 : vector<1x64xf32> to vector<128x64xf32>
    %20 = arith.addf %17, %19 : vector<128x64xf32>
    %c0_19 = arith.constant 0 : index
    %c0_20 = arith.constant 0 : index
    %21 = vector.load %arg8[%c0_19, %c0_20] : memref<128x64xf32, #tpu.memory_space<vmem>>, vector<128x64xf32>
    tpu.vector_store %arg8[%c0_19, %c0_20], %20 {strides = array<i32>} : memref<128x64xf32, #tpu.memory_space<vmem>>, vector<128x64xf32>,
    return
  }
  func.func @transform_0(%arg0: i32) -> (i32, i32) {
    %c0_i32 = arith.constant 0 : i32
    %c0_i32_0 = arith.constant 0 : i32
    return %arg0, %c0_i32 : i32, i32
  }
  func.func @transform_1(%arg0: i32) -> (i32, i32) {
    %c0_i32 = arith.constant 0 : i32
    %c0_i32_0 = arith.constant 0 : i32
    return %arg0, %c0_i32 : i32, i32
  }
  func.func @transform_2(%arg0: i32) -> (i32, i32) {
    %c0_i32 = arith.constant 0 : i32
    %c0_i32_0 = arith.constant 0 : i32
    return %arg0, %c0_i32 : i32, i32
  }
  func.func @transform_3(%arg0: i32) -> (i32, i32) {
    %c0_i32 = arith.constant 0 : i32
    %c0_i32_0 = arith.constant 0 : i32
    %c0_i32_1 = arith.constant 0 : i32
    return %c0_i32, %c0_i32_0 : i32, i32
  }
  func.func @transform_4(%arg0: i32) -> (i32, i32) {
    %c0_i32 = arith.constant 0 : i32
    %c0_i32_0 = arith.constant 0 : i32
    %c0_i32_1 = arith.constant 0 : i32
    return %c0_i32, %c0_i32_0 : i32, i32
  }
  func.func @transform_5(%arg0: i32) -> (i32, i32) {
    %c0_i32 = arith.constant 0 : i32
    %c0_i32_0 = arith.constant 0 : i32
    %c0_i32_1 = arith.constant 0 : i32
    return %c0_i32, %c0_i32_0 : i32, i32
  }
  func.func @transform_6(%arg0: i32) -> (i32, i32) {
    %c0_i32 = arith.constant 0 : i32
    %c0_i32_0 = arith.constant 0 : i32
    %c0_i32_1 = arith.constant 0 : i32
    return %c0_i32, %c0_i32_0 : i32, i32
  }
  func.func @transform_7(%arg0: i32) -> (i32, i32) {
    %c0_i32 = arith.constant 0 : i32
    %c0_i32_0 = arith.constant 0 : i32
    return %arg0, %c0_i32 : i32, i32
  }
}

</mosaic_0001>

<llo_original>
// kernel: tpu_custom_call.1
$region0: #{tpu_custom_call.1}
  #allocation0 [shape = 'u32[]', space=smem, size = 0x4, offset = 0x4, fixed_abs, tag = 'smem constant byte address 0x4 - core index']
  #allocation1 [shape = 'u32[144,128]{1,0:T(1,128)}', space=vmem, size = 0x12000, scoped, tag = 'internal scratch']
  %s0 = inlined_call_operand.vmem [shape: f32[256,32], index: 0, kind: input, shape index: {}]
  %s1 = inlined_call_operand.vmem [shape: f32[256,32], index: 1, kind: input, shape index: {}]
  %s2 = inlined_call_operand.vmem [shape: f32[256,32], index: 2, kind: input, shape index: {}]
  %s3 = inlined_call_operand.vmem [shape: f32[96,64], index: 3, kind: input, shape index: {}]
  %s4 = inlined_call_operand.vmem [shape: f32[1,64], index: 4, kind: input, shape index: {}]
  %s5 = inlined_call_operand.vmem [shape: f32[64,64], index: 5, kind: input, shape index: {}]
  %s6 = inlined_call_operand.vmem [shape: f32[1,64], index: 6, kind: input, shape index: {}]
  %s7 = inlined_call_operand.vmem [shape: f32[256,64], index: 7, kind: output, shape index: {}]
  %s8 = sld [smem:[#allocation0]]
  $region61: #{tpu_custom_call.1} parent=0
    _
  %s10 = ssub.s32 1, %s8
  %s11 = scalar_select 0, %s10, %s8
  loop: start=0, step=1, limit=4
  $region2: #{tpu_custom_call.1} parent=0 // loop_pre_header
    _
  $region3: #{tpu_custom_call.1} parent=0 // loop_header
    %s13 = sphi 0, %s17
    %p14 = scmp.ge.s32.totalorder %s13, 4
    %s23 = sphi 0, %s25
    %s26 = sphi 0, %s23
    %s27 = sphi 0, %s26
    %s43 = sphi 0, %s27
    %s49 = sphi 0, %s51
    %s52 = sphi 0, %s49
    %s53 = sphi 0, %s52
    %s69 = sphi 0, %s53
    %s75 = sphi 0, %s77
    %s78 = sphi 0, %s75
    %s79 = sphi 0, %s78
    %s95 = sphi 0, %s79
    %s99 = sphi 0, %s99
    %s101 = sphi 0, %s99
    %s102 = sphi 0, %s101
    %s116 = sphi 0, %s102
    %s120 = sphi 0, %s120
    %s122 = sphi 0, %s120
    %s123 = sphi 0, %s122
    %s137 = sphi 0, %s123
    %s141 = sphi 0, %s141
    %s143 = sphi 0, %s141
    %s144 = sphi 0, %s143
    %s158 = sphi 0, %s144
    %s162 = sphi 0, %s162
    %s164 = sphi 0, %s162
    %s165 = sphi 0, %s164
    %s179 = sphi 0, %s165
    %s185 = sphi 0, %s187
    %s188 = sphi 0, %s185
    %s189 = sphi 0, %s188
    %s205 = sphi 0, %s189
  $region4: #{tpu_custom_call.1} parent=0 // loop_header_branch
    %16 = sbr.rel (%p14) target = $region8
  $region5: #{tpu_custom_call.1} parent=0 // loop_body
    %s18 = ssub.s32 %s13, 1
    %s19 = ssub.s32 %s13, 2
    %s20 = sadd.s32 %s13, 1
    %s21 = ssub.s32 %s13, %s20
    %p22 = scmp.eq.s32.totalorder %s21, 0
    %s24 = sadd.s32 %s23, 1
    %s25 = scalar_select %p22, %s23, %s24
    %p28 = pneg %p22
    %p29 = scmp.eq.s32.totalorder %s13, 1
    %p30 = por %p28, %p29
    %p31 = scmp.ne.s32.totalorder %s23, %s26
    %p32 = scmp.eq.s32.totalorder %s13, 0
    %p33 = por %p31, %p32
    %p34 = scmp.ne.s32.totalorder %s23, %s26
    %p35 = scmp.eq.s32.totalorder %s18, 1
    %p36 = por %p34, %p35
    %p37 = scmp.ne.s32.totalorder %s26, %s27
    %p38 = scmp.eq.s32.totalorder %s18, 0
    %p39 = por %p37, %p38
    %p40 = scmp.ne.s32.totalorder %s26, %s27
    %p41 = scmp.eq.s32.totalorder %s19, 1
    %p42 = por %p40, %p41
    %p44 = scmp.ne.s32.totalorder %s27, %s43
    %p45 = scmp.eq.s32.totalorder %s19, 0
    %p46 = por %p44, %p45
    %s47 = ssub.s32 %s13, %s20
    %p48 = scmp.eq.s32.totalorder %s47, 0
    %s50 = sadd.s32 %s49, 1
    %s51 = scalar_select %p48, %s49, %s50
    %p54 = pneg %p48
    %p55 = scmp.eq.s32.totalorder %s13, 1
    %p56 = por %p54, %p55
    %p57 = scmp.ne.s32.totalorder %s49, %s52
    %p58 = scmp.eq.s32.totalorder %s13, 0
    %p59 = por %p57, %p58
    %p60 = scmp.ne.s32.totalorder %s49, %s52
    %p61 = scmp.eq.s32.totalorder %s18, 1
    %p62 = por %p60, %p61
    %p63 = scmp.ne.s32.totalorder %s52, %s53
    %p64 = scmp.eq.s32.totalorder %s18, 0
    %p65 = por %p63, %p64
    %p66 = scmp.ne.s32.totalorder %s52, %s53
    %p67 = scmp.eq.s32.totalorder %s19, 1
    %p68 = por %p66, %p67
    %p70 = scmp.ne.s32.totalorder %s53, %s69
    %p71 = scmp.eq.s32.totalorder %s19, 0
    %p72 = por %p70, %p71
    %s73 = ssub.s32 %s13, %s20
    %p74 = scmp.eq.s32.totalorder %s73, 0
    %s76 = sadd.s32 %s75, 1
    %s77 = scalar_select %p74, %s75, %s76
    %p80 = pneg %p74
    %p81 = scmp.eq.s32.totalorder %s13, 1
    %p82 = por %p80, %p81
    %p83 = scmp.ne.s32.totalorder %s75, %s78
    %p84 = scmp.eq.s32.totalorder %s13, 0
    %p85 = por %p83, %p84
    %p86 = scmp.ne.s32.totalorder %s75, %s78
    %p87 = scmp.eq.s32.totalorder %s18, 1
    %p88 = por %p86, %p87
    %p89 = scmp.ne.s32.totalorder %s78, %s79
    %p90 = scmp.eq.s32.totalorder %s18, 0
    %p91 = por %p89, %p90
    %p92 = scmp.ne.s32.totalorder %s78, %s79
    %p93 = scmp.eq.s32.totalorder %s19, 1
    %p94 = por %p92, %p93
    %p96 = scmp.ne.s32.totalorder %s79, %s95
    %p97 = scmp.eq.s32.totalorder %s19, 0
    %p98 = por %p96, %p97
    %s100 = sadd.s32 %s99, 1
    %p103 = scmp.eq.s32.totalorder %s13, 1
    %p104 = scmp.ne.s32.totalorder %s99, %s101
    %p105 = scmp.eq.s32.totalorder %s13, 0
    %p106 = por %p104, %p105
    %p107 = scmp.ne.s32.totalorder %s99, %s101
    %p108 = scmp.eq.s32.totalorder %s18, 1
    %p109 = por %p107, %p108
    %p110 = scmp.ne.s32.totalorder %s101, %s102
    %p111 = scmp.eq.s32.totalorder %s18, 0
    %p112 = por %p110, %p111
    %p113 = scmp.ne.s32.totalorder %s101, %s102
    %p114 = scmp.eq.s32.totalorder %s19, 1
    %p115 = por %p113, %p114
    %p117 = scmp.ne.s32.totalorder %s102, %s116
    %p118 = scmp.eq.s32.totalorder %s19, 0
    %p119 = por %p117, %p118
    %s121 = sadd.s32 %s120, 1
    %p124 = scmp.eq.s32.totalorder %s13, 1
    %p125 = scmp.ne.s32.totalorder %s120, %s122
    %p126 = scmp.eq.s32.totalorder %s13, 0
    %p127 = por %p125, %p126
    %p128 = scmp.ne.s32.totalorder %s120, %s122
    %p129 = scmp.eq.s32.totalorder %s18, 1
    %p130 = por %p128, %p129
    %p131 = scmp.ne.s32.totalorder %s122, %s123
    %p132 = scmp.eq.s32.totalorder %s18, 0
    %p133 = por %p131, %p132
    %p134 = scmp.ne.s32.totalorder %s122, %s123
    %p135 = scmp.eq.s32.totalorder %s19, 1
    %p136 = por %p134, %p135
    %p138 = scmp.ne.s32.totalorder %s123, %s137
    %p139 = scmp.eq.s32.totalorder %s19, 0
    %p140 = por %p138, %p139
    %s142 = sadd.s32 %s141, 1
    %p145 = scmp.eq.s32.totalorder %s13, 1
    %p146 = scmp.ne.s32.totalorder %s141, %s143
    %p147 = scmp.eq.s32.totalorder %s13, 0
    %p148 = por %p146, %p147
    %p149 = scmp.ne.s32.totalorder %s141, %s143
    %p150 = scmp.eq.s32.totalorder %s18, 1
    %p151 = por %p149, %p150
    %p152 = scmp.ne.s32.totalorder %s143, %s144
    %p153 = scmp.eq.s32.totalorder %s18, 0
    %p154 = por %p152, %p153
    %p155 = scmp.ne.s32.totalorder %s143, %s144
    %p156 = scmp.eq.s32.totalorder %s19, 1
    %p157 = por %p155, %p156
    %p159 = scmp.ne.s32.totalorder %s144, %s158
    %p160 = scmp.eq.s32.totalorder %s19, 0
    %p161 = por %p159, %p160
    %s163 = sadd.s32 %s162, 1
    %p166 = scmp.eq.s32.totalorder %s13, 1
    %p167 = scmp.ne.s32.totalorder %s162, %s164
    %p168 = scmp.eq.s32.totalorder %s13, 0
    %p169 = por %p167, %p168
    %p170 = scmp.ne.s32.totalorder %s162, %s164
    %p171 = scmp.eq.s32.totalorder %s18, 1
    %p172 = por %p170, %p171
    %p173 = scmp.ne.s32.totalorder %s164, %s165
    %p174 = scmp.eq.s32.totalorder %s18, 0
    %p175 = por %p173, %p174
    %p176 = scmp.ne.s32.totalorder %s164, %s165
    %p177 = scmp.eq.s32.totalorder %s19, 1
    %p178 = por %p176, %p177
    %p180 = scmp.ne.s32.totalorder %s165, %s179
    %p181 = scmp.eq.s32.totalorder %s19, 0
    %p182 = por %p180, %p181
    %s183 = ssub.s32 %s13, %s20
    %p184 = scmp.eq.s32.totalorder %s183, 0
    %s186 = sadd.s32 %s185, 1
    %s187 = scalar_select %p184, %s185, %s186
    %p190 = pneg %p184
    %p191 = scmp.eq.s32.totalorder %s13, 1
    %p192 = por %p190, %p191
    %p193 = scmp.ne.s32.totalorder %s185, %s188
    %p194 = scmp.eq.s32.totalorder %s13, 0
    %p195 = por %p193, %p194
    %p196 = scmp.ne.s32.totalorder %s185, %s188
    %p197 = scmp.eq.s32.totalorder %s18, 1
    %p198 = por %p196, %p197
    %p199 = scmp.ne.s32.totalorder %s188, %s189
    %p200 = scmp.eq.s32.totalorder %s18, 0
    %p201 = por %p199, %p200
    %p202 = scmp.ne.s32.totalorder %s188, %s189
    %p203 = scmp.eq.s32.totalorder %s19, 1
    %p204 = por %p202, %p203
    %p206 = scmp.ne.s32.totalorder %s189, %s205
    %p207 = scmp.eq.s32.totalorder %s19, 0
    %p208 = por %p206, %p207
    %p209 = scmp.le.s32.totalorder 1, %s13
    %p210 = scmp.lt.s32.totalorder %s13, 3
    %p211 = pnand %p209, %p210
    %p212 = pneg %p211
    // Predicated region
    $region9: #{tpu_custom_call.1} parent=5 // pred_check
      _
    $region10: #{tpu_custom_call.1} parent=5 // pred_check_branch
      %214 = sbr.rel (%p211) target = $region12
    $region11: #{tpu_custom_call.1} parent=5 // pred_region
      %s215 = ssub.s32 %s13, 1
      // Predicated region
      $region13: #{tpu_custom_call.1} parent=11 // pred_check
        %p216 = pneg %p112
      $region14: #{tpu_custom_call.1} parent=11 // pred_check_branch
        %218 = sbr.rel (%p216) target = $region16
      $region15: #{tpu_custom_call.1} parent=11 // pred_region
        _
      $region16: #{tpu_custom_call.1} parent=11 // pred_fallthru
        _
      // Predicated region
      $region17: #{tpu_custom_call.1} parent=11 // pred_check
        %p219 = pneg %p133
      $region18: #{tpu_custom_call.1} parent=11 // pred_check_branch
        %221 = sbr.rel (%p219) target = $region20
      $region19: #{tpu_custom_call.1} parent=11 // pred_region
        _
      $region20: #{tpu_custom_call.1} parent=11 // pred_fallthru
        _
      // Predicated region
      $region21: #{tpu_custom_call.1} parent=11 // pred_check
        %p222 = pneg %p154
      $region22: #{tpu_custom_call.1} parent=11 // pred_check_branch
        %224 = sbr.rel (%p222) target = $region24
      $region23: #{tpu_custom_call.1} parent=11 // pred_region
        _
      $region24: #{tpu_custom_call.1} parent=11 // pred_fallthru
        _
      // Predicated region
      $region25: #{tpu_custom_call.1} parent=11 // pred_check
        %p225 = pneg %p175
      $region26: #{tpu_custom_call.1} parent=11 // pred_check_branch
        %227 = sbr.rel (%p225) target = $region28
      $region27: #{tpu_custom_call.1} parent=11 // pred_region
        _
      $region28: #{tpu_custom_call.1} parent=11 // pred_fallthru
        _
    $region12: #{tpu_custom_call.1} parent=5 // pred_fallthru
      _
    %p228 = scmp.lt.s32.totalorder %s13, 2
    // Predicated region
    $region29: #{tpu_custom_call.1} parent=5 // pred_check
      %p229 = pneg %p228
    $region30: #{tpu_custom_call.1} parent=5 // pred_check_branch
      %231 = sbr.rel (%p229) target = $region32
    $region31: #{tpu_custom_call.1} parent=5 // pred_region
      // Predicated region
      $region33: #{tpu_custom_call.1} parent=31 // pred_check
        %p232 = pneg %p33
      $region34: #{tpu_custom_call.1} parent=31 // pred_check_branch
        %234 = sbr.rel (%p232) target = $region36
      $region35: #{tpu_custom_call.1} parent=31 // pred_region
        %s235 = smul.u32 16, %s13
        %p236 = scmp.lt.s32.totalorder %s235, 31
        %s237 = scalar_select %p236, %s235, 31
        %s238 = smul.addr %s237, 8
        %s239 = scalar_lea.vmem %s0, %s238
        %s240 = smul.u32 16, %s13
      $region36: #{tpu_custom_call.1} parent=31 // pred_fallthru
        _
      // Predicated region
      $region37: #{tpu_custom_call.1} parent=31 // pred_check
        %p241 = pneg %p59
      $region38: #{tpu_custom_call.1} parent=31 // pred_check_branch
        %243 = sbr.rel (%p241) target = $region40
      $region39: #{tpu_custom_call.1} parent=31 // pred_region
        %s244 = smul.u32 16, %s13
        %p245 = scmp.lt.s32.totalorder %s244, 31
        %s246 = scalar_select %p245, %s244, 31
        %s247 = smul.addr %s246, 8
        %s248 = scalar_lea.vmem %s1, %s247
        %s249 = smul.u32 16, %s13
      $region40: #{tpu_custom_call.1} parent=31 // pred_fallthru
        _
      // Predicated region
      $region41: #{tpu_custom_call.1} parent=31 // pred_check
        %p250 = pneg %p85
      $region42: #{tpu_custom_call.1} parent=31 // pred_check_branch
        %252 = sbr.rel (%p250) target = $region44
      $region43: #{tpu_custom_call.1} parent=31 // pred_region
        %s253 = smul.u32 16, %s13
        %p254 = scmp.lt.s32.totalorder %s253, 31
        %s255 = scalar_select %p254, %s253, 31
        %s256 = smul.addr %s255, 8
        %s257 = scalar_lea.vmem %s2, %s256
        %s258 = smul.u32 16, %s13
      $region44: #{tpu_custom_call.1} parent=31 // pred_fallthru
        _
    $region32: #{tpu_custom_call.1} parent=5 // pred_fallthru
      _
    %p259 = scmp.le.s32.totalorder 1, %s13
    %p260 = scmp.lt.s32.totalorder %s13, 3
    %p261 = pnand %p259, %p260
    %p262 = pneg %p261
    // Predicated region
    $region45: #{tpu_custom_call.1} parent=5 // pred_check
      _
    $region46: #{tpu_custom_call.1} parent=5 // pred_check_branch
      %264 = sbr.rel (%p261) target = $region48
    $region47: #{tpu_custom_call.1} parent=5 // pred_region
      %s265 = ssub.s32 %s13, 1
      %s266 = smul.u32 16, %s18
      %p267 = scmp.lt.s32.totalorder %s266, 31
      %s268 = scalar_select %p267, %s266, 31
      %s269 = smul.addr %s268, 8
      %s270 = scalar_lea.vmem %s0, %s269
      %p271 = pneg %p39
      %p272 = pneg %p36
      %s273 = smul.u32 16, %s18
      %p274 = scmp.lt.s32.totalorder %s273, 31
      %s275 = scalar_select %p274, %s273, 31
      %s276 = smul.addr %s275, 8
      %s277 = scalar_lea.vmem %s1, %s276
      %p278 = pneg %p65
      %p279 = pneg %p62
      %s280 = smul.u32 16, %s18
      %p281 = scmp.lt.s32.totalorder %s280, 31
      %s282 = scalar_select %p281, %s280, 31
      %s283 = smul.addr %s282, 8
      %s284 = scalar_lea.vmem %s2, %s283
      %p285 = pneg %p91
      %p286 = pneg %p88
      %p287 = pneg %p112
      %p288 = pneg %p109
      %p289 = pneg %p133
      %p290 = pneg %p130
      %p291 = pneg %p154
      %p292 = pneg %p151
      %p293 = pneg %p175
      %p294 = pneg %p172
      %p295 = pneg %p201
      %p296 = pneg %p198
      %s297 = smul.u32 16, %s18
      %p298 = scmp.lt.s32.totalorder %s297, 31
      %s299 = scalar_select %p298, %s297, 31
      %s300 = smul.addr %s299, 8
      %s301 = scalar_lea.vmem %s7, %s300
      %s302 = smul.u32 16, %s18
      %p303 = scmp.lt.s32.totalorder %s302, 31
      %s304 = scalar_select %p303, %s302, 31
      %s305 = smul.addr %s304, 8
      %s306 = scalar_lea.vmem %s0, %s305
      %s307 = smul.u32 16, %s18
      %s308 = smul.u32 16, %s18
      %p309 = scmp.lt.s32.totalorder %s308, 31
      %s310 = scalar_select %p309, %s308, 31
      %s311 = smul.addr %s310, 8
      %s312 = scalar_lea.vmem %s1, %s311
      %s313 = smul.u32 16, %s18
      %s314 = smul.u32 16, %s18
      %p315 = scmp.lt.s32.totalorder %s314, 31
      %s316 = scalar_select %p315, %s314, 31
      %s317 = smul.addr %s316, 8
      %s318 = scalar_lea.vmem %s2, %s317
      %s319 = smul.u32 16, %s18
      %s320 = smul.u32 16, %s18
      %p321 = scmp.lt.s32.totalorder %s320, 31
      %s322 = scalar_select %p321, %s320, 31
      %s323 = smul.addr %s322, 8
      %s324 = scalar_lea.vmem %s7, %s323
      %s325 = smul.u32 16, %s18
      %v326 = vld [vmem:[%s306] sm:$0xff]
      %v327 = vld [vmem:[%s306 + $0x8] sm:$0xff]
      %v328 = vld [vmem:[%s306 + $0x10] sm:$0xff]
      %v329 = vld [vmem:[%s306 + $0x18] sm:$0xff]
      %v330 = vld [vmem:[%s306 + $0x20] sm:$0xff]
      %v331 = vld [vmem:[%s306 + $0x28] sm:$0xff]
      %v332 = vld [vmem:[%s306 + $0x30] sm:$0xff]
      %v333 = vld [vmem:[%s306 + $0x38] sm:$0xff]
      %v334 = vld [vmem:[%s306 + $0x40] sm:$0xff]
      %v335 = vld [vmem:[%s306 + $0x48] sm:$0xff]
      %v336 = vld [vmem:[%s306 + $0x50] sm:$0xff]
      %v337 = vld [vmem:[%s306 + $0x58] sm:$0xff]
      %v338 = vld [vmem:[%s306 + $0x60] sm:$0xff]
      %v339 = vld [vmem:[%s306 + $0x68] sm:$0xff]
      %v340 = vld [vmem:[%s306 + $0x70] sm:$0xff]
      %v341 = vld [vmem:[%s306 + $0x78] sm:$0xff]
      %v342 = vld [vmem:[%s3] sm:$0xff]
      %v343 = vld [vmem:[%s3 + $0x8] sm:$0xff]
      %v344 = vld [vmem:[%s3 + $0x10] sm:$0xff]
      %v345 = vld [vmem:[%s3 + $0x18] sm:$0xff]
      %v346 = vld [vmem:[%s312] sm:$0xff]
      %v347 = vld [vmem:[%s312 + $0x8] sm:$0xff]
      %v348 = vld [vmem:[%s312 + $0x10] sm:$0xff]
      %v349 = vld [vmem:[%s312 + $0x18] sm:$0xff]
      %v350 = vld [vmem:[%s312 + $0x20] sm:$0xff]
      %v351 = vld [vmem:[%s312 + $0x28] sm:$0xff]
      %v352 = vld [vmem:[%s312 + $0x30] sm:$0xff]
      %v353 = vld [vmem:[%s312 + $0x38] sm:$0xff]
      %v354 = vld [vmem:[%s312 + $0x40] sm:$0xff]
      %v355 = vld [vmem:[%s312 + $0x48] sm:$0xff]
      %v356 = vld [vmem:[%s312 + $0x50] sm:$0xff]
      %v357 = vld [vmem:[%s312 + $0x58] sm:$0xff]
      %v358 = vld [vmem:[%s312 + $0x60] sm:$0xff]
      %v359 = vld [vmem:[%s312 + $0x68] sm:$0xff]
      %v360 = vld [vmem:[%s312 + $0x70] sm:$0xff]
      %v361 = vld [vmem:[%s312 + $0x78] sm:$0xff]
      %v362 = vld [vmem:[%s3 + $0x20] sm:$0xff]
      %v363 = vld [vmem:[%s3 + $0x28] sm:$0xff]
      %v364 = vld [vmem:[%s3 + $0x30] sm:$0xff]
      %v365 = vld [vmem:[%s3 + $0x38] sm:$0xff]
      %vm366 = vcmask 261120
      %v368 = vsel %vm366, %v346, 0
      %v371 = vsel %vm366, %v347, 0
      %v374 = vsel %vm366, %v348, 0
      %v377 = vsel %vm366, %v349, 0
      %v380 = vsel %vm366, %v350, 0
      %v383 = vsel %vm366, %v351, 0
      %v386 = vsel %vm366, %v352, 0
      %v389 = vsel %vm366, %v353, 0
      %v392 = vsel %vm366, %v354, 0
      %v395 = vsel %vm366, %v355, 0
      %v398 = vsel %vm366, %v356, 0
      %v401 = vsel %vm366, %v357, 0
      %v404 = vsel %vm366, %v358, 0
      %v407 = vsel %vm366, %v359, 0
      %v410 = vsel %vm366, %v360, 0
      %v413 = vsel %vm366, %v361, 0
      %415 = vmatprep.subr.mxu0 0.0
      %416 = vmatpush1.msra.mxu0 0.0
      %417 = vmatprep.subr.mxu0 0.0
      %418 = vmatpush1.msra.mxu0 0.0
      %419 = vmatprep.subr.mxu0 0.0
      %420 = vmatpush1.msra.mxu0 0.0
      %421 = vmatprep.subr.mxu0 0.0
      %422 = vmatpush1.msra.mxu0 0.0
      %423 = vmatprep.subr.mxu0 0.0
      %424 = vmatpush1.msra.mxu0 0.0
      %425 = vmatprep.subr.mxu0 0.0
      %426 = vmatpush1.msra.mxu0 0.0
      %427 = vmatprep.subr.mxu0 0.0
      %428 = vmatpush1.msra.mxu0 0.0
      %429 = vmatprep.subr.mxu0 0.0
      %430 = vmatpush1.msra.mxu0 0.0
      %431 = vmatprep.subr.mxu0 0.0
      %432 = vmatpush1.msra.mxu0 0.0
      %433 = vmatprep.subr.mxu0 0.0
      %434 = vmatpush1.msra.mxu0 0.0
      %435 = vmatprep.subr.mxu0 0.0
      %436 = vmatpush1.msra.mxu0 0.0
      %437 = vmatprep.subr.mxu0 0.0
      %438 = vmatpush1.msra.mxu0 0.0
      %439 = vmatprep.subr.mxu0 0.0
      %440 = vmatpush1.msra.mxu0 %v365
      %441 = vmatprep.subr.mxu0 0.0
      %442 = vmatpush1.msra.mxu0 %v364
      %443 = vmatprep.subr.mxu0 0.0
      %444 = vmatpush1.msra.mxu0 %v363
      %445 = vmatprep.subr.mxu0 0.0
      %446 = vmatpush1.msra.mxu0 %v362
      %447 = vmatprep.subr.mxu0 0.0
      %448 = vmatpush2.msra.mxu0 0.0
      %449 = vmatprep.subr.mxu0 0.0
      %450 = vmatpush2.msra.mxu0 0.0
      %451 = vmatprep.subr.mxu0 0.0
      %452 = vmatpush2.msra.mxu0 0.0
      %453 = vmatprep.subr.mxu0 0.0
      %454 = vmatpush2.msra.mxu0 0.0
      %455 = vmatprep.subr.mxu0 0.0
      %456 = vmatpush2.msra.mxu0 0.0
      %457 = vmatprep.subr.mxu0 0.0
      %458 = vmatpush2.msra.mxu0 0.0
      %459 = vmatprep.subr.mxu0 0.0
      %460 = vmatpush2.msra.mxu0 0.0
      %461 = vmatprep.subr.mxu0 0.0
      %462 = vmatpush2.msra.mxu0 0.0
      %463 = vmatprep.subr.mxu0 0.0
      %464 = vmatpush2.msra.mxu0 0.0
      %465 = vmatprep.subr.mxu0 0.0
      %466 = vmatpush2.msra.mxu0 0.0
      %467 = vmatprep.subr.mxu0 0.0
      %468 = vmatpush2.msra.mxu0 0.0
      %469 = vmatprep.subr.mxu0 0.0
      %470 = vmatpush2.msra.mxu0 0.0
      %471 = vmatprep.subr.mxu0 0.0
      %472 = vmatpush2.msra.mxu0 0.0
      %473 = vmatprep.subr.mxu0 0.0
      %474 = vmatpush2.msra.mxu0 0.0
      %475 = vmatprep.subr.mxu0 0.0
      %476 = vmatpush2.msra.mxu0 0.0
      %477 = vmatprep.subr.mxu0 0.0
      %478 = vmatpush2.msra.mxu0 0.0
      %479 = vmatprep.mubr.f32.mxu0 0.0
      %480 = vmatmul.mubr.f32.gmra.mxu0 %v368
      %v481 = vpop.f32.mrf.mxu0
      %v482 = vadd.f32 0.0, %v481
      %v483 = vpop.f32.mrf.mxu0
      %484 = vmatprep.mubr.f32.mxu0 0.0
      %485 = vmatmul.mubr.f32.gmra.mxu0 %v371
      %v486 = vpop.f32.mrf.mxu0
      %v487 = vadd.f32 0.0, %v486
      %v488 = vpop.f32.mrf.mxu0
      %489 = vmatprep.mubr.f32.mxu0 0.0
      %490 = vmatmul.mubr.f32.gmra.mxu0 %v374
      %v491 = vpop.f32.mrf.mxu0
      %v492 = vadd.f32 0.0, %v491
      %v493 = vpop.f32.mrf.mxu0
      %494 = vmatprep.mubr.f32.mxu0 0.0
      %495 = vmatmul.mubr.f32.gmra.mxu0 %v377
      %v496 = vpop.f32.mrf.mxu0
      %v497 = vadd.f32 0.0, %v496
      %v498 = vpop.f32.mrf.mxu0
      %499 = vmatprep.mubr.f32.mxu0 0.0
      %500 = vmatmul.mubr.f32.gmra.mxu0 %v380
      %v501 = vpop.f32.mrf.mxu0
      %v502 = vadd.f32 0.0, %v501
      %v503 = vpop.f32.mrf.mxu0
      %504 = vmatprep.mubr.f32.mxu0 0.0
      %505 = vmatmul.mubr.f32.gmra.mxu0 %v383
      %v506 = vpop.f32.mrf.mxu0
      %v507 = vadd.f32 0.0, %v506
      %v508 = vpop.f32.mrf.mxu0
      %509 = vmatprep.mubr.f32.mxu0 0.0
      %510 = vmatmul.mubr.f32.gmra.mxu0 %v386
      %v511 = vpop.f32.mrf.mxu0
      %v512 = vadd.f32 0.0, %v511
      %v513 = vpop.f32.mrf.mxu0
      %514 = vmatprep.mubr.f32.mxu0 0.0
      %515 = vmatmul.mubr.f32.gmra.mxu0 %v389
      %v516 = vpop.f32.mrf.mxu0
      %v517 = vadd.f32 0.0, %v516
      %v518 = vpop.f32.mrf.mxu0
      %519 = vmatprep.mubr.f32.mxu0 0.0
      %520 = vmatmul.mubr.f32.gmra.mxu0 %v392
      %v521 = vpop.f32.mrf.mxu0
      %v522 = vadd.f32 0.0, %v521
      %v523 = vpop.f32.mrf.mxu0
      %524 = vmatprep.mubr.f32.mxu0 0.0
      %525 = vmatmul.mubr.f32.gmra.mxu0 %v395
      %v526 = vpop.f32.mrf.mxu0
      %v527 = vadd.f32 0.0, %v526
      %v528 = vpop.f32.mrf.mxu0
      %529 = vmatprep.mubr.f32.mxu0 0.0
      %530 = vmatmul.mubr.f32.gmra.mxu0 %v398
      %v531 = vpop.f32.mrf.mxu0
      %v532 = vadd.f32 0.0, %v531
      %v533 = vpop.f32.mrf.mxu0
      %534 = vmatprep.mubr.f32.mxu0 0.0
      %535 = vmatmul.mubr.f32.gmra.mxu0 %v401
      %v536 = vpop.f32.mrf.mxu0
      %v537 = vadd.f32 0.0, %v536
      %v538 = vpop.f32.mrf.mxu0
      %539 = vmatprep.mubr.f32.mxu0 0.0
      %540 = vmatmul.mubr.f32.gmra.mxu0 %v404
      %v541 = vpop.f32.mrf.mxu0
      %v542 = vadd.f32 0.0, %v541
      %v543 = vpop.f32.mrf.mxu0
      %544 = vmatprep.mubr.f32.mxu0 0.0
      %545 = vmatmul.mubr.f32.gmra.mxu0 %v407
      %v546 = vpop.f32.mrf.mxu0
      %v547 = vadd.f32 0.0, %v546
      %v548 = vpop.f32.mrf.mxu0
      %549 = vmatprep.mubr.f32.mxu0 0.0
      %550 = vmatmul.mubr.f32.gmra.mxu0 %v410
      %v551 = vpop.f32.mrf.mxu0
      %v552 = vadd.f32 0.0, %v551
      %v553 = vpop.f32.mrf.mxu0
      %554 = vmatprep.mubr.f32.mxu0 0.0
      %555 = vmatmul.mubr.f32.gmra.mxu0 %v413
      %v556 = vpop.f32.mrf.mxu0
      %v557 = vadd.f32 0.0, %v556
      %v558 = vpop.f32.mrf.mxu0
      %559 = vdwg.mxu0
      %v561 = vsel %vm366, %v326, 0
      %v564 = vsel %vm366, %v327, 0
      %v567 = vsel %vm366, %v328, 0
      %v570 = vsel %vm366, %v329, 0
      %v573 = vsel %vm366, %v330, 0
      %v576 = vsel %vm366, %v331, 0
      %v579 = vsel %vm366, %v332, 0
      %v582 = vsel %vm366, %v333, 0
      %v585 = vsel %vm366, %v334, 0
      %v588 = vsel %vm366, %v335, 0
      %v591 = vsel %vm366, %v336, 0
      %v594 = vsel %vm366, %v337, 0
      %v597 = vsel %vm366, %v338, 0
      %v600 = vsel %vm366, %v339, 0
      %v603 = vsel %vm366, %v340, 0
      %v606 = vsel %vm366, %v341, 0
      %608 = vmatprep.subr.mxu0 0.0
      %609 = vmatpush1.msra.mxu0 0.0
      %610 = vmatprep.subr.mxu0 0.0
      %611 = vmatpush1.msra.mxu0 0.0
      %612 = vmatprep.subr.mxu0 0.0
      %613 = vmatpush1.msra.mxu0 0.0
      %614 = vmatprep.subr.mxu0 0.0
      %615 = vmatpush1.msra.mxu0 0.0
      %616 = vmatprep.subr.mxu0 0.0
      %617 = vmatpush1.msra.mxu0 0.0
      %618 = vmatprep.subr.mxu0 0.0
      %619 = vmatpush1.msra.mxu0 0.0
      %620 = vmatprep.subr.mxu0 0.0
      %621 = vmatpush1.msra.mxu0 0.0
      %622 = vmatprep.subr.mxu0 0.0
      %623 = vmatpush1.msra.mxu0 0.0
      %624 = vmatprep.subr.mxu0 0.0
      %625 = vmatpush1.msra.mxu0 0.0
      %626 = vmatprep.subr.mxu0 0.0
      %627 = vmatpush1.msra.mxu0 0.0
      %628 = vmatprep.subr.mxu0 0.0
      %629 = vmatpush1.msra.mxu0 0.0
      %630 = vmatprep.subr.mxu0 0.0
      %631 = vmatpush1.msra.mxu0 0.0
      %632 = vmatprep.subr.mxu0 0.0
      %633 = vmatpush1.msra.mxu0 %v345
      %634 = vmatprep.subr.mxu0 0.0
      %635 = vmatpush1.msra.mxu0 %v344
      %636 = vmatprep.subr.mxu0 0.0
      %637 = vmatpush1.msra.mxu0 %v343
      %638 = vmatprep.subr.mxu0 0.0
      %639 = vmatpush1.msra.mxu0 %v342
      %640 = vmatprep.subr.mxu0 0.0
      %641 = vmatpush2.msra.mxu0 0.0
      %642 = vmatprep.subr.mxu0 0.0
      %643 = vmatpush2.msra.mxu0 0.0
      %644 = vmatprep.subr.mxu0 0.0
      %645 = vmatpush2.msra.mxu0 0.0
      %646 = vmatprep.subr.mxu0 0.0
      %647 = vmatpush2.msra.mxu0 0.0
      %648 = vmatprep.subr.mxu0 0.0
      %649 = vmatpush2.msra.mxu0 0.0
      %650 = vmatprep.subr.mxu0 0.0
      %651 = vmatpush2.msra.mxu0 0.0
      %652 = vmatprep.subr.mxu0 0.0
      %653 = vmatpush2.msra.mxu0 0.0
      %654 = vmatprep.subr.mxu0 0.0
      %655 = vmatpush2.msra.mxu0 0.0
      %656 = vmatprep.subr.mxu0 0.0
      %657 = vmatpush2.msra.mxu0 0.0
      %658 = vmatprep.subr.mxu0 0.0
      %659 = vmatpush2.msra.mxu0 0.0
      %660 = vmatprep.subr.mxu0 0.0
      %661 = vmatpush2.msra.mxu0 0.0
      %662 = vmatprep.subr.mxu0 0.0
      %663 = vmatpush2.msra.mxu0 0.0
      %664 = vmatprep.subr.mxu0 0.0
      %665 = vmatpush2.msra.mxu0 0.0
      %666 = vmatprep.subr.mxu0 0.0
      %667 = vmatpush2.msra.mxu0 0.0
      %668 = vmatprep.subr.mxu0 0.0
      %669 = vmatpush2.msra.mxu0 0.0
      %670 = vmatprep.subr.mxu0 0.0
      %671 = vmatpush2.msra.mxu0 0.0
      %672 = vmatprep.mubr.f32.mxu0 0.0
      %673 = vmatmul.mubr.f32.gmra.mxu0 %v561
      %v674 = vpop.f32.mrf.mxu0
      %v675 = vadd.f32 %v482, %v674
      %v676 = vpop.f32.mrf.mxu0
      %677 = vmatprep.mubr.f32.mxu0 0.0
      %678 = vmatmul.mubr.f32.gmra.mxu0 %v564
      %v679 = vpop.f32.mrf.mxu0
      %v680 = vadd.f32 %v487, %v679
      %v681 = vpop.f32.mrf.mxu0
      %682 = vmatprep.mubr.f32.mxu0 0.0
      %683 = vmatmul.mubr.f32.gmra.mxu0 %v567
      %v684 = vpop.f32.mrf.mxu0
      %v685 = vadd.f32 %v492, %v684
      %v686 = vpop.f32.mrf.mxu0
      %687 = vmatprep.mubr.f32.mxu0 0.0
      %688 = vmatmul.mubr.f32.gmra.mxu0 %v570
      %v689 = vpop.f32.mrf.mxu0
      %v690 = vadd.f32 %v497, %v689
      %v691 = vpop.f32.mrf.mxu0
      %692 = vmatprep.mubr.f32.mxu0 0.0
      %693 = vmatmul.mubr.f32.gmra.mxu0 %v573
      %v694 = vpop.f32.mrf.mxu0
      %v695 = vadd.f32 %v502, %v694
      %v696 = vpop.f32.mrf.mxu0
      %697 = vmatprep.mubr.f32.mxu0 0.0
      %698 = vmatmul.mubr.f32.gmra.mxu0 %v576
      %v699 = vpop.f32.mrf.mxu0
      %v700 = vadd.f32 %v507, %v699
      %v701 = vpop.f32.mrf.mxu0
      %702 = vmatprep.mubr.f32.mxu0 0.0
      %703 = vmatmul.mubr.f32.gmra.mxu0 %v579
      %v704 = vpop.f32.mrf.mxu0
      %v705 = vadd.f32 %v512, %v704
      %v706 = vpop.f32.mrf.mxu0
      %707 = vmatprep.mubr.f32.mxu0 0.0
      %708 = vmatmul.mubr.f32.gmra.mxu0 %v582
      %v709 = vpop.f32.mrf.mxu0
      %v710 = vadd.f32 %v517, %v709
      %v711 = vpop.f32.mrf.mxu0
      %712 = vmatprep.mubr.f32.mxu0 0.0
      %713 = vmatmul.mubr.f32.gmra.mxu0 %v585
      %v714 = vpop.f32.mrf.mxu0
      %v715 = vadd.f32 %v522, %v714
      %v716 = vpop.f32.mrf.mxu0
      %717 = vmatprep.mubr.f32.mxu0 0.0
      %718 = vmatmul.mubr.f32.gmra.mxu0 %v588
      %v719 = vpop.f32.mrf.mxu0
      %v720 = vadd.f32 %v527, %v719
      %v721 = vpop.f32.mrf.mxu0
      %722 = vmatprep.mubr.f32.mxu0 0.0
      %723 = vmatmul.mubr.f32.gmra.mxu0 %v591
      %v724 = vpop.f32.mrf.mxu0
      %v725 = vadd.f32 %v532, %v724
      %v726 = vpop.f32.mrf.mxu0
      %727 = vmatprep.mubr.f32.mxu0 0.0
      %728 = vmatmul.mubr.f32.gmra.mxu0 %v594
      %v729 = vpop.f32.mrf.mxu0
      %v730 = vadd.f32 %v537, %v729
      %v731 = vpop.f32.mrf.mxu0
      %732 = vmatprep.mubr.f32.mxu0 0.0
      %733 = vmatmul.mubr.f32.gmra.mxu0 %v597
      %v734 = vpop.f32.mrf.mxu0
      %v735 = vadd.f32 %v542, %v734
      %v736 = vpop.f32.mrf.mxu0
      %737 = vmatprep.mubr.f32.mxu0 0.0
      %738 = vmatmul.mubr.f32.gmra.mxu0 %v600
      %v739 = vpop.f32.mrf.mxu0
      %v740 = vadd.f32 %v547, %v739
      %v741 = vpop.f32.mrf.mxu0
      %742 = vmatprep.mubr.f32.mxu0 0.0
      %743 = vmatmul.mubr.f32.gmra.mxu0 %v603
      %v744 = vpop.f32.mrf.mxu0
      %v745 = vadd.f32 %v552, %v744
      %v746 = vpop.f32.mrf.mxu0
      %747 = vmatprep.mubr.f32.mxu0 0.0
      %748 = vmatmul.mubr.f32.gmra.mxu0 %v606
      %v749 = vpop.f32.mrf.mxu0
      %v750 = vadd.f32 %v557, %v749
      %v751 = vpop.f32.mrf.mxu0
      %752 = vdwg.mxu0
      %v753 = vld [vmem:[%s318] sm:$0xff]
      %v754 = vld [vmem:[%s318 + $0x8] sm:$0xff]
      %v755 = vld [vmem:[%s318 + $0x10] sm:$0xff]
      %v756 = vld [vmem:[%s318 + $0x18] sm:$0xff]
      %v757 = vld [vmem:[%s318 + $0x20] sm:$0xff]
      %v758 = vld [vmem:[%s318 + $0x28] sm:$0xff]
      %v759 = vld [vmem:[%s318 + $0x30] sm:$0xff]
      %v760 = vld [vmem:[%s318 + $0x38] sm:$0xff]
      %v761 = vld [vmem:[%s318 + $0x40] sm:$0xff]
      %v762 = vld [vmem:[%s318 + $0x48] sm:$0xff]
      %v763 = vld [vmem:[%s318 + $0x50] sm:$0xff]
      %v764 = vld [vmem:[%s318 + $0x58] sm:$0xff]
      %v765 = vld [vmem:[%s318 + $0x60] sm:$0xff]
      %v766 = vld [vmem:[%s318 + $0x68] sm:$0xff]
      %v767 = vld [vmem:[%s318 + $0x70] sm:$0xff]
      %v768 = vld [vmem:[%s318 + $0x78] sm:$0xff]
      %v769 = vld [vmem:[%s3 + $0x40] sm:$0xff]
      %v770 = vld [vmem:[%s3 + $0x48] sm:$0xff]
      %v771 = vld [vmem:[%s3 + $0x50] sm:$0xff]
      %v772 = vld [vmem:[%s3 + $0x58] sm:$0xff]
      %v774 = vsel %vm366, %v753, 0
      %v777 = vsel %vm366, %v754, 0
      %v780 = vsel %vm366, %v755, 0
      %v783 = vsel %vm366, %v756, 0
      %v786 = vsel %vm366, %v757, 0
      %v789 = vsel %vm366, %v758, 0
      %v792 = vsel %vm366, %v759, 0
      %v795 = vsel %vm366, %v760, 0
      %v798 = vsel %vm366, %v761, 0
      %v801 = vsel %vm366, %v762, 0
      %v804 = vsel %vm366, %v763, 0
      %v807 = vsel %vm366, %v764, 0
      %v810 = vsel %vm366, %v765, 0
      %v813 = vsel %vm366, %v766, 0
      %v816 = vsel %vm366, %v767, 0
      %v819 = vsel %vm366, %v768, 0
      %821 = vmatprep.subr.mxu0 0.0
      %822 = vmatpush1.msra.mxu0 0.0
      %823 = vmatprep.subr.mxu0 0.0
      %824 = vmatpush1.msra.mxu0 0.0
      %825 = vmatprep.subr.mxu0 0.0
      %826 = vmatpush1.msra.mxu0 0.0
      %827 = vmatprep.subr.mxu0 0.0
      %828 = vmatpush1.msra.mxu0 0.0
      %829 = vmatprep.subr.mxu0 0.0
      %830 = vmatpush1.msra.mxu0 0.0
      %831 = vmatprep.subr.mxu0 0.0
      %832 = vmatpush1.msra.mxu0 0.0
      %833 = vmatprep.subr.mxu0 0.0
      %834 = vmatpush1.msra.mxu0 0.0
      %835 = vmatprep.subr.mxu0 0.0
      %836 = vmatpush1.msra.mxu0 0.0
      %837 = vmatprep.subr.mxu0 0.0
      %838 = vmatpush1.msra.mxu0 0.0
      %839 = vmatprep.subr.mxu0 0.0
      %840 = vmatpush1.msra.mxu0 0.0
      %841 = vmatprep.subr.mxu0 0.0
      %842 = vmatpush1.msra.mxu0 0.0
      %843 = vmatprep.subr.mxu0 0.0
      %844 = vmatpush1.msra.mxu0 0.0
      %845 = vmatprep.subr.mxu0 0.0
      %846 = vmatpush1.msra.mxu0 %v772
      %847 = vmatprep.subr.mxu0 0.0
      %848 = vmatpush1.msra.mxu0 %v771
      %849 = vmatprep.subr.mxu0 0.0
      %850 = vmatpush1.msra.mxu0 %v770
      %851 = vmatprep.subr.mxu0 0.0
      %852 = vmatpush1.msra.mxu0 %v769
      %853 = vmatprep.subr.mxu0 0.0
      %854 = vmatpush2.msra.mxu0 0.0
      %855 = vmatprep.subr.mxu0 0.0
      %856 = vmatpush2.msra.mxu0 0.0
      %857 = vmatprep.subr.mxu0 0.0
      %858 = vmatpush2.msra.mxu0 0.0
      %859 = vmatprep.subr.mxu0 0.0
      %860 = vmatpush2.msra.mxu0 0.0
      %861 = vmatprep.subr.mxu0 0.0
      %862 = vmatpush2.msra.mxu0 0.0
      %863 = vmatprep.subr.mxu0 0.0
      %864 = vmatpush2.msra.mxu0 0.0
      %865 = vmatprep.subr.mxu0 0.0
      %866 = vmatpush2.msra.mxu0 0.0
      %867 = vmatprep.subr.mxu0 0.0
      %868 = vmatpush2.msra.mxu0 0.0
      %869 = vmatprep.subr.mxu0 0.0
      %870 = vmatpush2.msra.mxu0 0.0
      %871 = vmatprep.subr.mxu0 0.0
      %872 = vmatpush2.msra.mxu0 0.0
      %873 = vmatprep.subr.mxu0 0.0
      %874 = vmatpush2.msra.mxu0 0.0
      %875 = vmatprep.subr.mxu0 0.0
      %876 = vmatpush2.msra.mxu0 0.0
      %877 = vmatprep.subr.mxu0 0.0
      %878 = vmatpush2.msra.mxu0 0.0
      %879 = vmatprep.subr.mxu0 0.0
      %880 = vmatpush2.msra.mxu0 0.0
      %881 = vmatprep.subr.mxu0 0.0
      %882 = vmatpush2.msra.mxu0 0.0
      %883 = vmatprep.subr.mxu0 0.0
      %884 = vmatpush2.msra.mxu0 0.0
      %885 = vmatprep.mubr.f32.mxu0 0.0
      %886 = vmatmul.mubr.f32.gmra.mxu0 %v774
      %v887 = vpop.f32.mrf.mxu0
      %v888 = vadd.f32 0.0, %v887
      %v889 = vpop.f32.mrf.mxu0
      %890 = vmatprep.mubr.f32.mxu0 0.0
      %891 = vmatmul.mubr.f32.gmra.mxu0 %v777
      %v892 = vpop.f32.mrf.mxu0
      %v893 = vadd.f32 0.0, %v892
      %v894 = vpop.f32.mrf.mxu0
      %895 = vmatprep.mubr.f32.mxu0 0.0
      %896 = vmatmul.mubr.f32.gmra.mxu0 %v780
      %v897 = vpop.f32.mrf.mxu0
      %v898 = vadd.f32 0.0, %v897
      %v899 = vpop.f32.mrf.mxu0
      %900 = vmatprep.mubr.f32.mxu0 0.0
      %901 = vmatmul.mubr.f32.gmra.mxu0 %v783
      %v902 = vpop.f32.mrf.mxu0
      %v903 = vadd.f32 0.0, %v902
      %v904 = vpop.f32.mrf.mxu0
      %905 = vmatprep.mubr.f32.mxu0 0.0
      %906 = vmatmul.mubr.f32.gmra.mxu0 %v786
      %v907 = vpop.f32.mrf.mxu0
      %v908 = vadd.f32 0.0, %v907
      %v909 = vpop.f32.mrf.mxu0
      %910 = vmatprep.mubr.f32.mxu0 0.0
      %911 = vmatmul.mubr.f32.gmra.mxu0 %v789
      %v912 = vpop.f32.mrf.mxu0
      %v913 = vadd.f32 0.0, %v912
      %v914 = vpop.f32.mrf.mxu0
      %915 = vmatprep.mubr.f32.mxu0 0.0
      %916 = vmatmul.mubr.f32.gmra.mxu0 %v792
      %v917 = vpop.f32.mrf.mxu0
      %v918 = vadd.f32 0.0, %v917
      %v919 = vpop.f32.mrf.mxu0
      %920 = vmatprep.mubr.f32.mxu0 0.0
      %921 = vmatmul.mubr.f32.gmra.mxu0 %v795
      %v922 = vpop.f32.mrf.mxu0
      %v923 = vadd.f32 0.0, %v922
      %v924 = vpop.f32.mrf.mxu0
      %925 = vmatprep.mubr.f32.mxu0 0.0
      %926 = vmatmul.mubr.f32.gmra.mxu0 %v798
      %v927 = vpop.f32.mrf.mxu0
      %v928 = vadd.f32 0.0, %v927
      %v929 = vpop.f32.mrf.mxu0
      %930 = vmatprep.mubr.f32.mxu0 0.0
      %931 = vmatmul.mubr.f32.gmra.mxu0 %v801
      %v932 = vpop.f32.mrf.mxu0
      %v933 = vadd.f32 0.0, %v932
      %v934 = vpop.f32.mrf.mxu0
      %935 = vmatprep.mubr.f32.mxu0 0.0
      %936 = vmatmul.mubr.f32.gmra.mxu0 %v804
      %v937 = vpop.f32.mrf.mxu0
      %v938 = vadd.f32 0.0, %v937
      %v939 = vpop.f32.mrf.mxu0
      %940 = vmatprep.mubr.f32.mxu0 0.0
      %941 = vmatmul.mubr.f32.gmra.mxu0 %v807
      %v942 = vpop.f32.mrf.mxu0
      %v943 = vadd.f32 0.0, %v942
      %v944 = vpop.f32.mrf.mxu0
      %945 = vmatprep.mubr.f32.mxu0 0.0
      %946 = vmatmul.mubr.f32.gmra.mxu0 %v810
      %v947 = vpop.f32.mrf.mxu0
      %v948 = vadd.f32 0.0, %v947
      %v949 = vpop.f32.mrf.mxu0
      %950 = vmatprep.mubr.f32.mxu0 0.0
      %951 = vmatmul.mubr.f32.gmra.mxu0 %v813
      %v952 = vpop.f32.mrf.mxu0
      %v953 = vadd.f32 0.0, %v952
      %v954 = vpop.f32.mrf.mxu0
      %955 = vmatprep.mubr.f32.mxu0 0.0
      %956 = vmatmul.mubr.f32.gmra.mxu0 %v816
      %v957 = vpop.f32.mrf.mxu0
      %v958 = vadd.f32 0.0, %v957
      %v959 = vpop.f32.mrf.mxu0
      %960 = vmatprep.mubr.f32.mxu0 0.0
      %961 = vmatmul.mubr.f32.gmra.mxu0 %v819
      %v962 = vpop.f32.mrf.mxu0
      %v963 = vadd.f32 0.0, %v962
      %v964 = vpop.f32.mrf.mxu0
      %965 = vdwg.mxu0
      %v966 = vadd.f32 %v675, %v888
      %v967 = vadd.f32 %v680, %v893
      %v968 = vadd.f32 %v685, %v898
      %v969 = vadd.f32 %v690, %v903
      %v970 = vadd.f32 %v695, %v908
      %v971 = vadd.f32 %v700, %v913
      %v972 = vadd.f32 %v705, %v918
      %v973 = vadd.f32 %v710, %v923
      %v974 = vadd.f32 %v715, %v928
      %v975 = vadd.f32 %v720, %v933
      %v976 = vadd.f32 %v725, %v938
      %v977 = vadd.f32 %v730, %v943
      %v978 = vadd.f32 %v735, %v948
      %v979 = vadd.f32 %v740, %v953
      %v980 = vadd.f32 %v745, %v958
      %v981 = vadd.f32 %v750, %v963
      %v982 = vld [vmem:[%s4] sm:$0x1]
      %v984 = vlaneseq
      %v985 = vshrl.u32 %v984, 7
      %v986 = vsub.s32 0, %v985
      %v987 = vrot.slane %v982, %v986
      %v989 = vadd.f32 %v966, %v987
      %v990 = vadd.f32 %v967, %v987
      %v991 = vadd.f32 %v968, %v987
      %v992 = vadd.f32 %v969, %v987
      %v993 = vadd.f32 %v970, %v987
      %v994 = vadd.f32 %v971, %v987
      %v995 = vadd.f32 %v972, %v987
      %v996 = vadd.f32 %v973, %v987
      %v997 = vadd.f32 %v974, %v987
      %v998 = vadd.f32 %v975, %v987
      %v999 = vadd.f32 %v976, %v987
      %v1000 = vadd.f32 %v977, %v987
      %v1001 = vadd.f32 %v978, %v987
      %v1002 = vadd.f32 %v979, %v987
      %v1003 = vadd.f32 %v980, %v987
      %v1004 = vadd.f32 %v981, %v987
      %v1005 = vmax.f32 %v989, 0.0
      %v1006 = vmax.f32 %v990, 0.0
      %v1007 = vmax.f32 %v991, 0.0
      %v1008 = vmax.f32 %v992, 0.0
      %v1009 = vmax.f32 %v993, 0.0
      %v1010 = vmax.f32 %v994, 0.0
      %v1011 = vmax.f32 %v995, 0.0
      %v1012 = vmax.f32 %v996, 0.0
      %v1013 = vmax.f32 %v997, 0.0
      %v1014 = vmax.f32 %v998, 0.0
      %v1015 = vmax.f32 %v999, 0.0
      %v1016 = vmax.f32 %v1000, 0.0
      %v1017 = vmax.f32 %v1001, 0.0
      %v1018 = vmax.f32 %v1002, 0.0
      %v1019 = vmax.f32 %v1003, 0.0
      %v1020 = vmax.f32 %v1004, 0.0
      %v1021 = vld [vmem:[%s5] sm:$0xff]
      %v1022 = vld [vmem:[%s5 + $0x8] sm:$0xff]
      %v1023 = vld [vmem:[%s5 + $0x10] sm:$0xff]
      %v1024 = vld [vmem:[%s5 + $0x18] sm:$0xff]
      %v1025 = vld [vmem:[%s5 + $0x20] sm:$0xff]
      %v1026 = vld [vmem:[%s5 + $0x28] sm:$0xff]
      %v1027 = vld [vmem:[%s5 + $0x30] sm:$0xff]
      %v1028 = vld [vmem:[%s5 + $0x38] sm:$0xff]
      %v1029 = vld [vmem:[%s6] sm:$0x1]
      %v1031 = vlaneseq
      %v1032 = vshrl.u32 %v1031, 7
      %v1033 = vsub.s32 0, %v1032
      %v1034 = vrot.slane %v1029, %v1033
      %vm1036 = vcmask 523264
      %v1038 = vsel %vm1036, %v1005, 0
      %v1041 = vsel %vm1036, %v1006, 0
      %v1044 = vsel %vm1036, %v1007, 0
      %v1047 = vsel %vm1036, %v1008, 0
      %v1050 = vsel %vm1036, %v1009, 0
      %v1053 = vsel %vm1036, %v1010, 0
      %v1056 = vsel %vm1036, %v1011, 0
      %v1059 = vsel %vm1036, %v1012, 0
      %v1062 = vsel %vm1036, %v1013, 0
      %v1065 = vsel %vm1036, %v1014, 0
      %v1068 = vsel %vm1036, %v1015, 0
      %v1071 = vsel %vm1036, %v1016, 0
      %v1074 = vsel %vm1036, %v1017, 0
      %v1077 = vsel %vm1036, %v1018, 0
      %v1080 = vsel %vm1036, %v1019, 0
      %v1083 = vsel %vm1036, %v1020, 0
      %1085 = vmatprep.subr.mxu0 0.0
      %1086 = vmatpush1.msra.mxu0 0.0
      %1087 = vmatprep.subr.mxu0 0.0
      %1088 = vmatpush1.msra.mxu0 0.0
      %1089 = vmatprep.subr.mxu0 0.0
      %1090 = vmatpush1.msra.mxu0 0.0
      %1091 = vmatprep.subr.mxu0 0.0
      %1092 = vmatpush1.msra.mxu0 0.0
      %1093 = vmatprep.subr.mxu0 0.0
      %1094 = vmatpush1.msra.mxu0 0.0
      %1095 = vmatprep.subr.mxu0 0.0
      %1096 = vmatpush1.msra.mxu0 0.0
      %1097 = vmatprep.subr.mxu0 0.0
      %1098 = vmatpush1.msra.mxu0 0.0
      %1099 = vmatprep.subr.mxu0 0.0
      %1100 = vmatpush1.msra.mxu0 0.0
      %1101 = vmatprep.subr.mxu0 0.0
      %1102 = vmatpush1.msra.mxu0 %v1028
      %1103 = vmatprep.subr.mxu0 0.0
      %1104 = vmatpush1.msra.mxu0 %v1027
      %1105 = vmatprep.subr.mxu0 0.0
      %1106 = vmatpush1.msra.mxu0 %v1026
      %1107 = vmatprep.subr.mxu0 0.0
      %1108 = vmatpush1.msra.mxu0 %v1025
      %1109 = vmatprep.subr.mxu0 0.0
      %1110 = vmatpush1.msra.mxu0 %v1024
      %1111 = vmatprep.subr.mxu0 0.0
      %1112 = vmatpush1.msra.mxu0 %v1023
      %1113 = vmatprep.subr.mxu0 0.0
      %1114 = vmatpush1.msra.mxu0 %v1022
      %1115 = vmatprep.subr.mxu0 0.0
      %1116 = vmatpush1.msra.mxu0 %v1021
      %1117 = vmatprep.subr.mxu0 0.0
      %1118 = vmatpush2.msra.mxu0 0.0
      %1119 = vmatprep.subr.mxu0 0.0
      %1120 = vmatpush2.msra.mxu0 0.0
      %1121 = vmatprep.subr.mxu0 0.0
      %1122 = vmatpush2.msra.mxu0 0.0
      %1123 = vmatprep.subr.mxu0 0.0
      %1124 = vmatpush2.msra.mxu0 0.0
      %1125 = vmatprep.subr.mxu0 0.0
      %1126 = vmatpush2.msra.mxu0 0.0
      %1127 = vmatprep.subr.mxu0 0.0
      %1128 = vmatpush2.msra.mxu0 0.0
      %1129 = vmatprep.subr.mxu0 0.0
      %1130 = vmatpush2.msra.mxu0 0.0
      %1131 = vmatprep.subr.mxu0 0.0
      %1132 = vmatpush2.msra.mxu0 0.0
      %1133 = vmatprep.subr.mxu0 0.0
      %1134 = vmatpush2.msra.mxu0 0.0
      %1135 = vmatprep.subr.mxu0 0.0
      %1136 = vmatpush2.msra.mxu0 0.0
      %1137 = vmatprep.subr.mxu0 0.0
      %1138 = vmatpush2.msra.mxu0 0.0
      %1139 = vmatprep.subr.mxu0 0.0
      %1140 = vmatpush2.msra.mxu0 0.0
      %1141 = vmatprep.subr.mxu0 0.0
      %1142 = vmatpush2.msra.mxu0 0.0
      %1143 = vmatprep.subr.mxu0 0.0
      %1144 = vmatpush2.msra.mxu0 0.0
      %1145 = vmatprep.subr.mxu0 0.0
      %1146 = vmatpush2.msra.mxu0 0.0
      %1147 = vmatprep.subr.mxu0 0.0
      %1148 = vmatpush2.msra.mxu0 0.0
      %1149 = vmatprep.mubr.f32.mxu0 0.0
      %1150 = vmatmul.mubr.f32.gmra.mxu0 %v1038
      %v1151 = vpop.f32.mrf.mxu0
      %v1152 = vadd.f32 %v1034, %v1151
      %v1153 = vpop.f32.mrf.mxu0
      %1154 = vmatprep.mubr.f32.mxu0 0.0
      %1155 = vmatmul.mubr.f32.gmra.mxu0 %v1041
      %v1156 = vpop.f32.mrf.mxu0
      %v1157 = vadd.f32 %v1034, %v1156
      %v1158 = vpop.f32.mrf.mxu0
      %1159 = vmatprep.mubr.f32.mxu0 0.0
      %1160 = vmatmul.mubr.f32.gmra.mxu0 %v1044
      %v1161 = vpop.f32.mrf.mxu0
      %v1162 = vadd.f32 %v1034, %v1161
      %v1163 = vpop.f32.mrf.mxu0
      %1164 = vmatprep.mubr.f32.mxu0 0.0
      %1165 = vmatmul.mubr.f32.gmra.mxu0 %v1047
      %v1166 = vpop.f32.mrf.mxu0
      %v1167 = vadd.f32 %v1034, %v1166
      %v1168 = vpop.f32.mrf.mxu0
      %1169 = vmatprep.mubr.f32.mxu0 0.0
      %1170 = vmatmul.mubr.f32.gmra.mxu0 %v1050
      %v1171 = vpop.f32.mrf.mxu0
      %v1172 = vadd.f32 %v1034, %v1171
      %v1173 = vpop.f32.mrf.mxu0
      %1174 = vmatprep.mubr.f32.mxu0 0.0
      %1175 = vmatmul.mubr.f32.gmra.mxu0 %v1053
      %v1176 = vpop.f32.mrf.mxu0
      %v1177 = vadd.f32 %v1034, %v1176
      %v1178 = vpop.f32.mrf.mxu0
      %1179 = vmatprep.mubr.f32.mxu0 0.0
      %1180 = vmatmul.mubr.f32.gmra.mxu0 %v1056
      %v1181 = vpop.f32.mrf.mxu0
      %v1182 = vadd.f32 %v1034, %v1181
      %v1183 = vpop.f32.mrf.mxu0
      %1184 = vmatprep.mubr.f32.mxu0 0.0
      %1185 = vmatmul.mubr.f32.gmra.mxu0 %v1059
      %v1186 = vpop.f32.mrf.mxu0
      %v1187 = vadd.f32 %v1034, %v1186
      %v1188 = vpop.f32.mrf.mxu0
      %1189 = vmatprep.mubr.f32.mxu0 0.0
      %1190 = vmatmul.mubr.f32.gmra.mxu0 %v1062
      %v1191 = vpop.f32.mrf.mxu0
      %v1192 = vadd.f32 %v1034, %v1191
      %v1193 = vpop.f32.mrf.mxu0
      %1194 = vmatprep.mubr.f32.mxu0 0.0
      %1195 = vmatmul.mubr.f32.gmra.mxu0 %v1065
      %v1196 = vpop.f32.mrf.mxu0
      %v1197 = vadd.f32 %v1034, %v1196
      %v1198 = vpop.f32.mrf.mxu0
      %1199 = vmatprep.mubr.f32.mxu0 0.0
      %1200 = vmatmul.mubr.f32.gmra.mxu0 %v1068
      %v1201 = vpop.f32.mrf.mxu0
      %v1202 = vadd.f32 %v1034, %v1201
      %v1203 = vpop.f32.mrf.mxu0
      %1204 = vmatprep.mubr.f32.mxu0 0.0
      %1205 = vmatmul.mubr.f32.gmra.mxu0 %v1071
      %v1206 = vpop.f32.mrf.mxu0
      %v1207 = vadd.f32 %v1034, %v1206
      %v1208 = vpop.f32.mrf.mxu0
      %1209 = vmatprep.mubr.f32.mxu0 0.0
      %1210 = vmatmul.mubr.f32.gmra.mxu0 %v1074
      %v1211 = vpop.f32.mrf.mxu0
      %v1212 = vadd.f32 %v1034, %v1211
      %v1213 = vpop.f32.mrf.mxu0
      %1214 = vmatprep.mubr.f32.mxu0 0.0
      %1215 = vmatmul.mubr.f32.gmra.mxu0 %v1077
      %v1216 = vpop.f32.mrf.mxu0
      %v1217 = vadd.f32 %v1034, %v1216
      %v1218 = vpop.f32.mrf.mxu0
      %1219 = vmatprep.mubr.f32.mxu0 0.0
      %1220 = vmatmul.mubr.f32.gmra.mxu0 %v1080
      %v1221 = vpop.f32.mrf.mxu0
      %v1222 = vadd.f32 %v1034, %v1221
      %v1223 = vpop.f32.mrf.mxu0
      %1224 = vmatprep.mubr.f32.mxu0 0.0
      %1225 = vmatmul.mubr.f32.gmra.mxu0 %v1083
      %v1226 = vpop.f32.mrf.mxu0
      %v1227 = vadd.f32 %v1034, %v1226
      %v1228 = vpop.f32.mrf.mxu0
      %1229 = vdwg.mxu0
      %1230 = vst.msk [vmem:[%s324] sm:$0xff] %vm1036, %v1152
      %1231 = vst.msk [vmem:[%s324 + $0x8] sm:$0xff] %vm1036, %v1157
      %1232 = vst.msk [vmem:[%s324 + $0x10] sm:$0xff] %vm1036, %v1162
      %1233 = vst.msk [vmem:[%s324 + $0x18] sm:$0xff] %vm1036, %v1167
      %1234 = vst.msk [vmem:[%s324 + $0x20] sm:$0xff] %vm1036, %v1172
      %1235 = vst.msk [vmem:[%s324 + $0x28] sm:$0xff] %vm1036, %v1177
      %1236 = vst.msk [vmem:[%s324 + $0x30] sm:$0xff] %vm1036, %v1182
      %1237 = vst.msk [vmem:[%s324 + $0x38] sm:$0xff] %vm1036, %v1187
      %1238 = vst.msk [vmem:[%s324 + $0x40] sm:$0xff] %vm1036, %v1192
      %1239 = vst.msk [vmem:[%s324 + $0x48] sm:$0xff] %vm1036, %v1197
      %1240 = vst.msk [vmem:[%s324 + $0x50] sm:$0xff] %vm1036, %v1202
      %1241 = vst.msk [vmem:[%s324 + $0x58] sm:$0xff] %vm1036, %v1207
      %1242 = vst.msk [vmem:[%s324 + $0x60] sm:$0xff] %vm1036, %v1212
      %1243 = vst.msk [vmem:[%s324 + $0x68] sm:$0xff] %vm1036, %v1217
      %1244 = vst.msk [vmem:[%s324 + $0x70] sm:$0xff] %vm1036, %v1222
      %1245 = vst.msk [vmem:[%s324 + $0x78] sm:$0xff] %vm1036, %v1227
      %s1246 = smul.u32 16, %s18
      %p1247 = scmp.lt.s32.totalorder %s1246, 31
      %s1248 = scalar_select %p1247, %s1246, 31
      %s1249 = smul.addr %s1248, 8
      %s1250 = scalar_lea.vmem %s7, %s1249
      // Predicated region
      $region49: #{tpu_custom_call.1} parent=47 // pred_check
        %p1251 = pneg %p198
      $region50: #{tpu_custom_call.1} parent=47 // pred_check_branch
        %1253 = sbr.rel (%p1251) target = $region52
      $region51: #{tpu_custom_call.1} parent=47 // pred_region
        %s1254 = smul.u32 16, %s18
      $region52: #{tpu_custom_call.1} parent=47 // pred_fallthru
        _
    $region48: #{tpu_custom_call.1} parent=5 // pred_fallthru
      _
    %p1255 = scmp.le.s32.totalorder 2, %s13
    // Predicated region
    $region53: #{tpu_custom_call.1} parent=5 // pred_check
      %p1256 = pneg %p1255
    $region54: #{tpu_custom_call.1} parent=5 // pred_check_branch
      %1258 = sbr.rel (%p1256) target = $region56
    $region55: #{tpu_custom_call.1} parent=5 // pred_region
      %s1259 = ssub.s32 %s13, 2
      // Predicated region
      $region57: #{tpu_custom_call.1} parent=55 // pred_check
        %p1260 = pneg %p204
      $region58: #{tpu_custom_call.1} parent=55 // pred_check_branch
        %1262 = sbr.rel (%p1260) target = $region60
      $region59: #{tpu_custom_call.1} parent=55 // pred_region
        %s1263 = smul.u32 16, %s19
        %p1264 = scmp.lt.s32.totalorder %s1263, 31
        %s1265 = scalar_select %p1264, %s1263, 31
        %s1266 = smul.addr %s1265, 8
        %s1267 = scalar_lea.vmem %s7, %s1266
      $region60: #{tpu_custom_call.1} parent=55 // pred_fallthru
        _
    $region56: #{tpu_custom_call.1} parent=5 // pred_fallthru
      _
  $region6: #{tpu_custom_call.1} parent=0 // loop_footer
    %s17 = sadd.s32 1, %s13
  $region7: #{tpu_custom_call.1} parent=0 // loop_footer_branch
    %12 = sbr.rel target = $region3
  $region8: #{tpu_custom_call.1} parent=0 // loop_exit
    _

</llo_original>
